<compile_context>
chip_gen: v6e
topology: v6e:2x2x1
jax: 0.10.0
libtpu: 0.0.40
codegen_flags: <defaults>
</compile_context>

<pallas_src>
import math

import jax
import jax.numpy as jnp
from jax.experimental import pallas as pl
from jax.experimental.pallas import tpu as pltpu

D_EMBED = 128
HEADS = 2
HIDDEN = 256
P = 113
E = 2 * D_EMBED          # 256
HEAD_DIM = E // HEADS    # 128
PPAD = 128               # lane-dense padding of the 113-wide dims


# ----------------------------------------------------------------------------
# Kernel
# ----------------------------------------------------------------------------
def ffn_attention_kernel(ids_ref, t_ref, bf_ref, w2_ref, b2_ref, o_ref):
    """Fused: two-hot gather-matmul (embed + L=1 attention + linear1) + relu + linear2."""
    b = ids_ref.shape[0]
    ids1 = ids_ref[:, 0:1]                                    # (b, 1) int32
    ids2 = ids_ref[:, 1:2]

    # Two-hot row: 1.0 at column ids1 (top half of T) and ids2 + 128 (bottom half).
    col = jax.lax.broadcasted_iota(jnp.int32, (b, E), 1)      # (b, 256)
    mask = jnp.logical_or(col == ids1, col == ids2 + PPAD)
    two_hot = jnp.where(mask, 1.0, 0.0).astype(t_ref.dtype)   # (b, 256)

    # embed + (softmax==1 attention) + linear1 pre-activation, all folded in T.
    h1 = (jnp.dot(two_hot, t_ref[...], preferred_element_type=jnp.float32)
          + bf_ref[...])                                      # (b, 256) f32
    h1 = jnp.maximum(h1, 0.0)                                 # ReLU

    # linear2 with lane-padded 128-wide output (unmasked full-width vst).
    out = (jnp.dot(h1.astype(w2_ref.dtype), w2_ref[...],
                   preferred_element_type=jnp.float32)
           + b2_ref[...])                                     # (b, 128) f32
    o_ref[...] = out.astype(o_ref.dtype)


# ----------------------------------------------------------------------------
# Host-side wrapper
# ----------------------------------------------------------------------------
def ffn_attention_forward(x1, x2, folded, *, block_b=1024, core_parallel=False,
                          out_dtype=jnp.float32, slice_output=True):
    B = x1.shape[0]
    ids = jnp.stack([x1.astype(jnp.int32), x2.astype(jnp.int32)], axis=1)  # (B, 2)
    w_args = (folded["t_stack"], folded["b_f"], folded["w2_pad"], folded["b2_pad"])

    if B <= block_b:
        # Whole problem (<~1 MiB) fits in VMEM: grid-free call, whole-array
        # blocks, zero per-step pipeline overhead.
        out = pl.pallas_call(
            ffn_attention_kernel,
            out_shape=jax.ShapeDtypeStruct((B, PPAD), out_dtype),
        )(ids, *w_args)
        return out[:, :P] if slice_output else out

    # Large-B path: tile the batch; weights stay VMEM-resident (constant block
    # index => no per-step weight DMA).  Per-step VMEM (block_b=1024, bf16
    # weights) is ~2.5 MiB, far under every chip's scoped-VMEM default, so no
    # vmem_limit override is needed.
    # NOTE: the weight blocks never change index, so the compiler keeps them
    # resident; pipeline_mode=pl.Buffered(1) on them would only shave ~0.2 MiB
    # of double-buffer VMEM (relevant only if block_b is pushed much higher on v5e).
    Bp = ((B + block_b - 1) // block_b) * block_b
    ids_p = jnp.pad(ids, ((0, Bp - B), (0, 0)))               # pad rows use id 0
    in_specs = [pl.BlockSpec((block_b, 2), lambda i: (i, 0))]
    in_specs += [pl.BlockSpec(w.shape, lambda i: (0, 0)) for w in w_args]
    batch_sem = pltpu.CORE_PARALLEL if core_parallel else "parallel"
    out = pl.pallas_call(
        ffn_attention_kernel,
        out_shape=jax.ShapeDtypeStruct((Bp, PPAD), out_dtype),
        grid=(Bp // block_b,),
        in_specs=in_specs,
        out_specs=pl.BlockSpec((block_b, PPAD), lambda i: (i, 0)),
        compiler_params=pltpu.CompilerParams(dimension_semantics=(batch_sem,)),
    )(ids_p, *w_args)
    if slice_output:
        return out[:B, :P]
    # Padded (Bp, 128) slab: lets the consumer fuse the slice and avoids an
    # extra full read+write of the output in the memory-bound regime.
    return out


# ----------------------------------------------------------------------------
# Parameters (synthetic init mirroring the module) + offline folding
# ----------------------------------------------------------------------------
def _xavier_normal(key, shape):
    fan_out, fan_in = shape[0], shape[1]
    std = math.sqrt(2.0 / (fan_in + fan_out))
    return std * jax.random.normal(key, shape, dtype=jnp.float32)


def init_params(key):
    """Raw parameters with the module's shapes; weights pre-transposed to (in, out)."""
    ks = jax.random.split(key, 7)
    embed = _xavier_normal(ks[0], (P, D_EMBED))
    wq = _xavier_normal(ks[1], (E, E))
    wk = _xavier_normal(ks[2], (E, E))
    wv = _xavier_normal(ks[3], (E, E))
    wo = _xavier_normal(ks[4], (E, E))
    w1 = _xavier_normal(ks[5], (HIDDEN, E))
    w2 = _xavier_normal(ks[6], (P, HIDDEN))
    z = lambda n: jnp.zeros((1, n), jnp.float32)
    return dict(
        embed=embed,
        wq_t=wq.T, bq=z(E), wk_t=wk.T, bk=z(E), wv_t=wv.T, bv=z(E),
        wo_t=wo.T, bo=z(E),
        w1_t=w1.T, b1=z(HIDDEN),
        w2_t=w2.T, b2=z(P),
    )


def fold_params(p, dtype=jnp.bfloat16):
    """Offline folding: embed + Wv@Wo@W1 -> stacked table T; pad 113-wide dims to 128.

    `dtype` controls the MXU operand precision (bf16 recommended on TPU;
    accumulation stays f32 in the kernel, biases stay f32).
    """
    wf = p["wv_t"] @ p["wo_t"] @ p["w1_t"]                          # (256, 256)
    bf = (p["bv"] @ p["wo_t"] + p["bo"]) @ p["w1_t"] + p["b1"]      # (1, 256)
    emb_pad = jnp.zeros((PPAD, D_EMBED), jnp.float32).at[:P].set(p["embed"])
    t_top = emb_pad @ wf[:D_EMBED]                                  # (128, 256)
    t_bot = emb_pad @ wf[D_EMBED:]                                  # (128, 256)
    t_stack = jnp.concatenate([t_top, t_bot], axis=0).astype(dtype) # (256, 256)
    w2_pad = (jnp.zeros((HIDDEN, PPAD), jnp.float32)
              .at[:, :P].set(p["w2_t"]).astype(dtype))              # (256, 128)
    b2_pad = jnp.zeros((1, PPAD), jnp.float32).at[:, :P].set(p["b2"])
    return dict(t_stack=t_stack, b_f=bf.astype(jnp.float32),
                w2_pad=w2_pad, b2_pad=b2_pad)


# ----------------------------------------------------------------------------
# Pure-JAX reference of the ORIGINAL (unfolded) forward, for correctness check
# ----------------------------------------------------------------------------
def reference_forward(x1, x2, params):
    emb = params["embed"]
    x = jnp.concatenate([emb[x1], emb[x2]], axis=1)                 # (B, 256)
    q = x @ params["wq_t"] + params["bq"]
    k = x @ params["wk_t"] + params["bk"]
    v = x @ params["wv_t"] + params["bv"]
    scale = 1.0 / math.sqrt(HEAD_DIM)
    ctxs = []
    for h in range(HEADS):
        sl = slice(h * HEAD_DIM, (h + 1) * HEAD_DIM)
        s = jnp.sum(q[:, sl] * k[:, sl], axis=-1, keepdims=True) * scale  # (B, 1)
        prob = jax.nn.softmax(s[..., None], axis=-1)[..., 0]             # == 1.0
        ctxs.append(prob * v[:, sl])
    ctx = jnp.concatenate(ctxs, axis=-1)
    attn = ctx @ params["wo_t"] + params["bo"]
    h1 = jax.nn.relu(attn @ params["w1_t"] + params["b1"])
    return h1 @ params["w2_t"] + params["b2"]


if __name__ == "__main__":
    key = jax.random.PRNGKey(0)
    pkey, k1, k2 = jax.random.split(key, 3)
    params = init_params(pkey)

    B = 8
    x1 = jax.random.randint(k1, (B,), 0, P, dtype=jnp.int32)
    x2 = jax.random.randint(k2, (B,), 0, P, dtype=jnp.int32)
    ref = reference_forward(x1, x2, params)

    # 1) Exact f32 folded weights, grid-free (small-B) path -> tight tolerance.
    folded_f32 = fold_params(params, dtype=jnp.float32)
    out = ffn_attention_forward(x1, x2, folded_f32)
    jax.block_until_ready(out)
    assert out.shape == (B, P), out.shape
    assert jnp.allclose(out, ref, atol=5e-4, rtol=5e-4), \
        float(jnp.max(jnp.abs(out - ref)))

    # 2) bf16 MXU fast path (feedback #2) -> bf16-appropriate tolerance.
    folded_bf16 = fold_params(params, dtype=jnp.bfloat16)
    out_bf = ffn_attention_forward(x1, x2, folded_bf16)
    jax.block_until_ready(out_bf)
    assert jnp.allclose(out_bf, ref, atol=1e-2, rtol=1e-2), \
        float(jnp.max(jnp.abs(out_bf - ref)))

    # 3) Tiled (grid) path with a tiny tile to exercise batch padding + pipeline.
    B2 = 40
    x1b = jax.random.randint(jax.random.PRNGKey(1), (B2,), 0, P, dtype=jnp.int32)
    x2b = jax.random.randint(jax.random.PRNGKey(2), (B2,), 0, P, dtype=jnp.int32)
    out_tiled = ffn_attention_forward(x1b, x2b, folded_f32, block_b=16)
    jax.block_until_ready(out_tiled)
    ref_tiled = reference_forward(x1b, x2b, params)
    assert out_tiled.shape == (B2, P), out_tiled.shape
    assert jnp.allclose(out_tiled, ref_tiled, atol=5e-4, rtol=5e-4), \
        float(jnp.max(jnp.abs(out_tiled - ref_tiled)))

    print("KERNEL_OK")
</pallas_src>

<mosaic_0001>
module attributes {stable_mosaic.version = 11 : i64} {
  func.func @ffn_attention_kernel(%arg0: memref<8x2xi32, #tpu.memory_space<vmem>>, %arg1: memref<256x256xf32, #tpu.memory_space<vmem>>, %arg2: memref<1x256xf32, #tpu.memory_space<vmem>>, %arg3: memref<256x128xf32, #tpu.memory_space<vmem>>, %arg4: memref<1x128xf32, #tpu.memory_space<vmem>>, %arg5: memref<8x128xf32, #tpu.memory_space<vmem>>) attributes {dimension_semantics = [], scalar_prefetch = 0 : i64, scratch_operands = 0 : i64, tpu.core_type = #tpu.core_type<tc>} {
    %c0 = arith.constant 0 : index
    %c0_0 = arith.constant 0 : index
    %0 = vector.load %arg0[%c0, %c0_0] : memref<8x2xi32, #tpu.memory_space<vmem>>, vector<8x1xi32>
    %c0_1 = arith.constant 0 : index
    %c1 = arith.constant 1 : index
    %1 = vector.load %arg0[%c0_1, %c1] : memref<8x2xi32, #tpu.memory_space<vmem>>, vector<8x1xi32>
    %2 = tpu.iota {dimensions = array<i32: 1>} : vector<8x256xi32>
    %3 = vector.broadcast %0 : vector<8x1xi32> to vector<8x256xi32>
    %4 = arith.cmpi eq, %2, %3 : vector<8x256xi32>
    %c128_i32 = arith.constant 128 : i32
    %5 = vector.broadcast %c128_i32 : i32 to vector<8x1xi32>
    %6 = arith.addi %1, %5 : vector<8x1xi32>
    %7 = vector.broadcast %6 : vector<8x1xi32> to vector<8x256xi32>
    %8 = arith.cmpi eq, %2, %7 : vector<8x256xi32>
    %9 = arith.ori %4, %8 : vector<8x256xi1>
    %cst = arith.constant 1.000000e+00 : f32
    %cst_2 = arith.constant 0.000000e+00 : f32
    %10 = vector.broadcast %cst : f32 to vector<8x256xf32>
    %11 = vector.broadcast %cst_2 : f32 to vector<8x256xf32>
    %12 = arith.select %9, %10, %11 : vector<8x256xi1>, vector<8x256xf32>
    %c0_3 = arith.constant 0 : index
    %c0_4 = arith.constant 0 : index
    %13 = vector.load %arg1[%c0_3, %c0_4] : memref<256x256xf32, #tpu.memory_space<vmem>>, vector<256x256xf32>
    %cst_5 = arith.constant dense<0.000000e+00> : vector<8x256xf32>
    %14 = tpu.matmul %12, %13, %cst_5 {dimension_numbers = #tpu.dot_dimension_numbers<[1], [0], [0], [1], [0, 0, 1, 1], [], []>} : vector<8x256xf32>, vector<256x256xf32>, vector<8x256xf32> -> vector<8x256xf32>
    %c0_6 = arith.constant 0 : index
    %c0_7 = arith.constant 0 : index
    %15 = vector.load %arg2[%c0_6, %c0_7] : memref<1x256xf32, #tpu.memory_space<vmem>>, vector<1x256xf32>
    %16 = vector.broadcast %15 : vector<1x256xf32> to vector<8x256xf32>
    %17 = arith.addf %14, %16 : vector<8x256xf32>
    %cst_8 = arith.constant 0.000000e+00 : f32
    %18 = vector.broadcast %cst_8 : f32 to vector<8x256xf32>
    %19 = arith.maximumf %17, %18 : vector<8x256xf32>
    %c0_9 = arith.constant 0 : index
    %c0_10 = arith.constant 0 : index
    %20 = vector.load %arg3[%c0_9, %c0_10] : memref<256x128xf32, #tpu.memory_space<vmem>>, vector<256x128xf32>
    %cst_11 = arith.constant dense<0.000000e+00> : vector<8x128xf32>
    %21 = tpu.matmul %19, %20, %cst_11 {dimension_numbers = #tpu.dot_dimension_numbers<[1], [0], [0], [1], [0, 0, 1, 1], [], []>} : vector<8x256xf32>, vector<256x128xf32>, vector<8x128xf32> -> vector<8x128xf32>
    %c0_12 = arith.constant 0 : index
    %c0_13 = arith.constant 0 : index
    %22 = vector.load %arg4[%c0_12, %c0_13] : memref<1x128xf32, #tpu.memory_space<vmem>>, vector<1x128xf32>
    %23 = vector.broadcast %22 : vector<1x128xf32> to vector<8x128xf32>
    %24 = arith.addf %21, %23 : vector<8x128xf32>
    %c0_14 = arith.constant 0 : index
    %c0_15 = arith.constant 0 : index
    %25 = vector.load %arg5[%c0_14, %c0_15] : memref<8x128xf32, #tpu.memory_space<vmem>>, vector<8x128xf32>
    tpu.vector_store %arg5[%c0_14, %c0_15], %24 {strides = array<i32>} : memref<8x128xf32, #tpu.memory_space<vmem>>, vector<8x128xf32>,
    return
  }
}

</mosaic_0001>

<llo_original>
// kernel: tpu_custom_call.1
$region0: #{tpu_custom_call.1}
  #allocation0 [shape = 'u32[]', space=smem, size = 0x4, offset = 0x4, fixed_abs, tag = 'smem constant byte address 0x4 - core index']
  #allocation1 [shape = 'u32[144,128]{1,0:T(1,128)}', space=vmem, size = 0x12000, scoped, tag = 'internal scratch']
  %s0 = inlined_call_operand.vmem [shape: s32[8,2], index: 0, kind: input, shape index: {}]
  %s1 = inlined_call_operand.hbm [shape: f32[256,256], index: 1, kind: input, shape index: {}]
  %s2 = inlined_call_operand.vmem [shape: f32[1,256], index: 2, kind: input, shape index: {}]
  %s3 = inlined_call_operand.hbm [shape: f32[256,128], index: 3, kind: input, shape index: {}]
  %s4 = inlined_call_operand.vmem [shape: f32[1,128], index: 4, kind: input, shape index: {}]
  %s5 = inlined_call_operand.hbm [shape: f32[8,128], index: 5, kind: output, shape index: {}]
  %s6 = sld [smem:[#allocation0]]
  $region38: #{tpu_custom_call.1} parent=0
    _
  %s8 = ssub.s32 1, %s6
  %s9 = scalar_select 0, %s8, %s6
  $region1: #{tpu_custom_call.1} parent=0
    #allocation2 [shape = 'u8[262144]{0}', space=vmem, size = 0x40000, scoped, tag = 'input window, operand 1, single buffered']
    #allocation3 [shape = 's32[1]{0}', space=sflag, size = 0x4, scoped, tag = 'scoped memory for tpu_custom_call.1']
    #allocation4 [shape = 's32[1]{0}', space=sflag, size = 0x4, scoped, tag = 'scoped memory for tpu_custom_call.1']
    #allocation5 [shape = 'u8[131072]{0}', space=vmem, size = 0x20000, scoped, tag = 'input window, operand 3, single buffered']
    #allocation6 [shape = 's32[1]{0}', space=sflag, size = 0x4, scoped, tag = 'scoped memory for tpu_custom_call.1']
    #allocation7 [shape = 'u8[4096]{0}', space=vmem, size = 0x1000, scoped, tag = 'output window, operand 0, single buffered']
    %10 = vsyncpa [#allocation3], 0
    %11 = vsyncpa [#allocation6], 0
    %12 = vsyncpa [#allocation4], 0
    // Predicated region
    $region2: #{tpu_custom_call.1} parent=1 // pred_check
      _
    $region3: #{tpu_custom_call.1} parent=1 // pred_check_branch
      %14 = sbr.rel (0) target = $region5
    $region4: #{tpu_custom_call.1} parent=1 // pred_region
      _
    $region5: #{tpu_custom_call.1} parent=1 // pred_fallthru
      _
    // Predicated region
    $region6: #{tpu_custom_call.1} parent=1 // pred_check
      _
    $region7: #{tpu_custom_call.1} parent=1 // pred_check_branch
      %16 = sbr.rel (0) target = $region9
    $region8: #{tpu_custom_call.1} parent=1 // pred_region
      %s18 = ssub.s32 8192, 8192
      %19 = vsyncadd [#allocation3], %s18
      %s20 = sshll.u32 [#allocation2], 4
      %s21 = int_to_ptr.vmem [resolvable:$true] %s20
      %26 = dma.hbm_to_vmem [thread:$0]  %s1, 8192, %s21, [#allocation3], 256, 256, 16
    $region9: #{tpu_custom_call.1} parent=1 // pred_fallthru
      _
    // Predicated region
    $region10: #{tpu_custom_call.1} parent=1 // pred_check
      _
    $region11: #{tpu_custom_call.1} parent=1 // pred_check_branch
      %28 = sbr.rel (0) target = $region13
    $region12: #{tpu_custom_call.1} parent=1 // pred_region
      _
    $region13: #{tpu_custom_call.1} parent=1 // pred_fallthru
      _
    // Predicated region
    $region14: #{tpu_custom_call.1} parent=1 // pred_check
      _
    $region15: #{tpu_custom_call.1} parent=1 // pred_check_branch
      %30 = sbr.rel (0) target = $region17
    $region16: #{tpu_custom_call.1} parent=1 // pred_region
      %s32 = ssub.s32 4096, 4096
      %33 = vsyncadd [#allocation6], %s32
      %s34 = sshll.u32 [#allocation5], 4
      %s35 = int_to_ptr.vmem [resolvable:$true] %s34
      %40 = dma.hbm_to_vmem [thread:$0]  %s3, 4096, %s35, [#allocation6], 128, 128, 8
    $region17: #{tpu_custom_call.1} parent=1 // pred_fallthru
      _
    // Predicated region
    $region18: #{tpu_custom_call.1} parent=1 // pred_check
      _
    $region19: #{tpu_custom_call.1} parent=1 // pred_check_branch
      %42 = sbr.rel (0) target = $region21
    $region20: #{tpu_custom_call.1} parent=1 // pred_region
      _
    $region21: #{tpu_custom_call.1} parent=1 // pred_fallthru
      _
    // Predicated region
    $region22: #{tpu_custom_call.1} parent=1 // pred_check
      _
    $region23: #{tpu_custom_call.1} parent=1 // pred_check_branch
      %44 = sbr.rel (0) target = $region25
    $region24: #{tpu_custom_call.1} parent=1 // pred_region
      %45 = dma.done [#allocation3], 8192
    $region25: #{tpu_custom_call.1} parent=1 // pred_fallthru
      _
    // Predicated region
    $region26: #{tpu_custom_call.1} parent=1 // pred_check
      _
    $region27: #{tpu_custom_call.1} parent=1 // pred_check_branch
      %47 = sbr.rel (0) target = $region29
    $region28: #{tpu_custom_call.1} parent=1 // pred_region
      %48 = dma.done [#allocation6], 4096
    $region29: #{tpu_custom_call.1} parent=1 // pred_fallthru
      _
    %v49 = vld [vmem:[%s0] sm:$0xff]
    %v50 = vlaneseq
    %v51 = vand.u32 %v50, 127
    %v52 = vadd.s32 %v51, 128
    %53 = vset.pattern.permute.xlu0 0
    %54 = vperm.xlu0 %53, %v49
    %v55 = vpop.permute.xlu0 %54
    %vm56 = vcmp.eq.s32.totalorder %v51, %v55
    %vm57 = vcmp.eq.s32.totalorder %v52, %v55
    %v58 = vadd.s32 %v49, 128
    %59 = vset.pattern.permute.xlu0 1
    %60 = vperm.xlu0 %59, %v58
    %v61 = vpop.permute.xlu0 %60
    %vm62 = vcmp.eq.s32.totalorder %v51, %v61
    %vm63 = vcmp.eq.s32.totalorder %v52, %v61
    %vm64 = vmor %vm56, %vm62
    %vm65 = vmor %vm57, %vm63
    %v66 = vsel %vm64, 1.0, 0.0
    %v67 = vsel %vm65, 1.0, 0.0
    %v68 = vld [vmem:[#allocation2] sm:$0xff]
    %v69 = vld [vmem:[#allocation2 + $0x8] sm:$0xff]
    %v70 = vld [vmem:[#allocation2 + $0x10] sm:$0xff]
    %v71 = vld [vmem:[#allocation2 + $0x18] sm:$0xff]
    %v72 = vld [vmem:[#allocation2 + $0x20] sm:$0xff]
    %v73 = vld [vmem:[#allocation2 + $0x28] sm:$0xff]
    %v74 = vld [vmem:[#allocation2 + $0x30] sm:$0xff]
    %v75 = vld [vmem:[#allocation2 + $0x38] sm:$0xff]
    %v76 = vld [vmem:[#allocation2 + $0x40] sm:$0xff]
    %v77 = vld [vmem:[#allocation2 + $0x48] sm:$0xff]
    %v78 = vld [vmem:[#allocation2 + $0x50] sm:$0xff]
    %v79 = vld [vmem:[#allocation2 + $0x58] sm:$0xff]
    %v80 = vld [vmem:[#allocation2 + $0x60] sm:$0xff]
    %v81 = vld [vmem:[#allocation2 + $0x68] sm:$0xff]
    %v82 = vld [vmem:[#allocation2 + $0x70] sm:$0xff]
    %v83 = vld [vmem:[#allocation2 + $0x78] sm:$0xff]
    %v84 = vld [vmem:[#allocation2 + $0x80] sm:$0xff]
    %v85 = vld [vmem:[#allocation2 + $0x88] sm:$0xff]
    %v86 = vld [vmem:[#allocation2 + $0x90] sm:$0xff]
    %v87 = vld [vmem:[#allocation2 + $0x98] sm:$0xff]
    %v88 = vld [vmem:[#allocation2 + $0xa0] sm:$0xff]
    %v89 = vld [vmem:[#allocation2 + $0xa8] sm:$0xff]
    %v90 = vld [vmem:[#allocation2 + $0xb0] sm:$0xff]
    %v91 = vld [vmem:[#allocation2 + $0xb8] sm:$0xff]
    %v92 = vld [vmem:[#allocation2 + $0xc0] sm:$0xff]
    %v93 = vld [vmem:[#allocation2 + $0xc8] sm:$0xff]
    %v94 = vld [vmem:[#allocation2 + $0xd0] sm:$0xff]
    %v95 = vld [vmem:[#allocation2 + $0xd8] sm:$0xff]
    %v96 = vld [vmem:[#allocation2 + $0xe0] sm:$0xff]
    %v97 = vld [vmem:[#allocation2 + $0xe8] sm:$0xff]
    %v98 = vld [vmem:[#allocation2 + $0xf0] sm:$0xff]
    %v99 = vld [vmem:[#allocation2 + $0xf8] sm:$0xff]
    %v100 = vld [vmem:[#allocation2 + $0x100] sm:$0xff]
    %v101 = vld [vmem:[#allocation2 + $0x108] sm:$0xff]
    %v102 = vld [vmem:[#allocation2 + $0x110] sm:$0xff]
    %v103 = vld [vmem:[#allocation2 + $0x118] sm:$0xff]
    %v104 = vld [vmem:[#allocation2 + $0x120] sm:$0xff]
    %v105 = vld [vmem:[#allocation2 + $0x128] sm:$0xff]
    %v106 = vld [vmem:[#allocation2 + $0x130] sm:$0xff]
    %v107 = vld [vmem:[#allocation2 + $0x138] sm:$0xff]
    %v108 = vld [vmem:[#allocation2 + $0x140] sm:$0xff]
    %v109 = vld [vmem:[#allocation2 + $0x148] sm:$0xff]
    %v110 = vld [vmem:[#allocation2 + $0x150] sm:$0xff]
    %v111 = vld [vmem:[#allocation2 + $0x158] sm:$0xff]
    %v112 = vld [vmem:[#allocation2 + $0x160] sm:$0xff]
    %v113 = vld [vmem:[#allocation2 + $0x168] sm:$0xff]
    %v114 = vld [vmem:[#allocation2 + $0x170] sm:$0xff]
    %v115 = vld [vmem:[#allocation2 + $0x178] sm:$0xff]
    %v116 = vld [vmem:[#allocation2 + $0x180] sm:$0xff]
    %v117 = vld [vmem:[#allocation2 + $0x188] sm:$0xff]
    %v118 = vld [vmem:[#allocation2 + $0x190] sm:$0xff]
    %v119 = vld [vmem:[#allocation2 + $0x198] sm:$0xff]
    %v120 = vld [vmem:[#allocation2 + $0x1a0] sm:$0xff]
    %v121 = vld [vmem:[#allocation2 + $0x1a8] sm:$0xff]
    %v122 = vld [vmem:[#allocation2 + $0x1b0] sm:$0xff]
    %v123 = vld [vmem:[#allocation2 + $0x1b8] sm:$0xff]
    %v124 = vld [vmem:[#allocation2 + $0x1c0] sm:$0xff]
    %v125 = vld [vmem:[#allocation2 + $0x1c8] sm:$0xff]
    %v126 = vld [vmem:[#allocation2 + $0x1d0] sm:$0xff]
    %v127 = vld [vmem:[#allocation2 + $0x1d8] sm:$0xff]
    %v128 = vld [vmem:[#allocation2 + $0x1e0] sm:$0xff]
    %v129 = vld [vmem:[#allocation2 + $0x1e8] sm:$0xff]
    %v130 = vld [vmem:[#allocation2 + $0x1f0] sm:$0xff]
    %v131 = vld [vmem:[#allocation2 + $0x1f8] sm:$0xff]
    %v132 = vld [vmem:[%s2] sm:$0x3]
    %v134 = vlaneseq
    %v135 = vshrl.u32 %v134, 7
    %v136 = vsub.s32 0, %v135
    %v137 = vrot.slane %v132, %v136
    %v138 = vlaneseq
    %v139 = vshrl.u32 %v138, 7
    %v140 = vsub.s32 1, %v139
    %v141 = vrot.slane %v132, %v140
    %144 = vmatprep.subr.mxu0 %v99
    %145 = vmatpush1.msra.mxu0 %v98
    %146 = vmatprep.subr.mxu0 %v97
    %147 = vmatpush1.msra.mxu0 %v96
    %148 = vmatprep.subr.mxu0 %v95
    %149 = vmatpush1.msra.mxu0 %v94
    %150 = vmatprep.subr.mxu0 %v93
    %151 = vmatpush1.msra.mxu0 %v92
    %152 = vmatprep.subr.mxu0 %v91
    %153 = vmatpush1.msra.mxu0 %v90
    %154 = vmatprep.subr.mxu0 %v89
    %155 = vmatpush1.msra.mxu0 %v88
    %156 = vmatprep.subr.mxu0 %v87
    %157 = vmatpush1.msra.mxu0 %v86
    %158 = vmatprep.subr.mxu0 %v85
    %159 = vmatpush1.msra.mxu0 %v84
    %160 = vmatprep.subr.mxu0 %v83
    %161 = vmatpush1.msra.mxu0 %v82
    %162 = vmatprep.subr.mxu0 %v81
    %163 = vmatpush1.msra.mxu0 %v80
    %164 = vmatprep.subr.mxu0 %v79
    %165 = vmatpush1.msra.mxu0 %v78
    %166 = vmatprep.subr.mxu0 %v77
    %167 = vmatpush1.msra.mxu0 %v76
    %168 = vmatprep.subr.mxu0 %v75
    %169 = vmatpush1.msra.mxu0 %v74
    %170 = vmatprep.subr.mxu0 %v73
    %171 = vmatpush1.msra.mxu0 %v72
    %172 = vmatprep.subr.mxu0 %v71
    %173 = vmatpush1.msra.mxu0 %v70
    %174 = vmatprep.subr.mxu0 %v69
    %175 = vmatpush1.msra.mxu0 %v68
    %176 = vmatprep.subr.mxu0 %v131
    %177 = vmatpush2.msra.mxu0 %v130
    %178 = vmatprep.subr.mxu0 %v129
    %179 = vmatpush2.msra.mxu0 %v128
    %180 = vmatprep.subr.mxu0 %v127
    %181 = vmatpush2.msra.mxu0 %v126
    %182 = vmatprep.subr.mxu0 %v125
    %183 = vmatpush2.msra.mxu0 %v124
    %184 = vmatprep.subr.mxu0 %v123
    %185 = vmatpush2.msra.mxu0 %v122
    %186 = vmatprep.subr.mxu0 %v121
    %187 = vmatpush2.msra.mxu0 %v120
    %188 = vmatprep.subr.mxu0 %v119
    %189 = vmatpush2.msra.mxu0 %v118
    %190 = vmatprep.subr.mxu0 %v117
    %191 = vmatpush2.msra.mxu0 %v116
    %192 = vmatprep.subr.mxu0 %v115
    %193 = vmatpush2.msra.mxu0 %v114
    %194 = vmatprep.subr.mxu0 %v113
    %195 = vmatpush2.msra.mxu0 %v112
    %196 = vmatprep.subr.mxu0 %v111
    %197 = vmatpush2.msra.mxu0 %v110
    %198 = vmatprep.subr.mxu0 %v109
    %199 = vmatpush2.msra.mxu0 %v108
    %200 = vmatprep.subr.mxu0 %v107
    %201 = vmatpush2.msra.mxu0 %v106
    %202 = vmatprep.subr.mxu0 %v105
    %203 = vmatpush2.msra.mxu0 %v104
    %204 = vmatprep.subr.mxu0 %v103
    %205 = vmatpush2.msra.mxu0 %v102
    %206 = vmatprep.subr.mxu0 %v101
    %207 = vmatpush2.msra.mxu0 %v100
    %208 = vmatprep.mubr.f32.mxu0 %v67
    %209 = vmatmul.mubr.f32.gmra.mxu0 %v66
    %v210 = vpop.f32.mrf.mxu0
    %v211 = vadd.f32 %v137, %v210
    %v212 = vpop.f32.mrf.mxu0
    %v213 = vadd.f32 %v141, %v212
    %214 = vdwg.mxu0
    %v215 = vmax.f32 %v211, 0.0
    %v216 = vmax.f32 %v213, 0.0
    %v217 = vld [vmem:[#allocation5] sm:$0xff]
    %v218 = vld [vmem:[#allocation5 + $0x8] sm:$0xff]
    %v219 = vld [vmem:[#allocation5 + $0x10] sm:$0xff]
    %v220 = vld [vmem:[#allocation5 + $0x18] sm:$0xff]
    %v221 = vld [vmem:[#allocation5 + $0x20] sm:$0xff]
    %v222 = vld [vmem:[#allocation5 + $0x28] sm:$0xff]
    %v223 = vld [vmem:[#allocation5 + $0x30] sm:$0xff]
    %v224 = vld [vmem:[#allocation5 + $0x38] sm:$0xff]
    %v225 = vld [vmem:[#allocation5 + $0x40] sm:$0xff]
    %v226 = vld [vmem:[#allocation5 + $0x48] sm:$0xff]
    %v227 = vld [vmem:[#allocation5 + $0x50] sm:$0xff]
    %v228 = vld [vmem:[#allocation5 + $0x58] sm:$0xff]
    %v229 = vld [vmem:[#allocation5 + $0x60] sm:$0xff]
    %v230 = vld [vmem:[#allocation5 + $0x68] sm:$0xff]
    %v231 = vld [vmem:[#allocation5 + $0x70] sm:$0xff]
    %v232 = vld [vmem:[#allocation5 + $0x78] sm:$0xff]
    %v233 = vld [vmem:[#allocation5 + $0x80] sm:$0xff]
    %v234 = vld [vmem:[#allocation5 + $0x88] sm:$0xff]
    %v235 = vld [vmem:[#allocation5 + $0x90] sm:$0xff]
    %v236 = vld [vmem:[#allocation5 + $0x98] sm:$0xff]
    %v237 = vld [vmem:[#allocation5 + $0xa0] sm:$0xff]
    %v238 = vld [vmem:[#allocation5 + $0xa8] sm:$0xff]
    %v239 = vld [vmem:[#allocation5 + $0xb0] sm:$0xff]
    %v240 = vld [vmem:[#allocation5 + $0xb8] sm:$0xff]
    %v241 = vld [vmem:[#allocation5 + $0xc0] sm:$0xff]
    %v242 = vld [vmem:[#allocation5 + $0xc8] sm:$0xff]
    %v243 = vld [vmem:[#allocation5 + $0xd0] sm:$0xff]
    %v244 = vld [vmem:[#allocation5 + $0xd8] sm:$0xff]
    %v245 = vld [vmem:[#allocation5 + $0xe0] sm:$0xff]
    %v246 = vld [vmem:[#allocation5 + $0xe8] sm:$0xff]
    %v247 = vld [vmem:[#allocation5 + $0xf0] sm:$0xff]
    %v248 = vld [vmem:[#allocation5 + $0xf8] sm:$0xff]
    %v249 = vld [vmem:[%s4] sm:$0x1]
    %v251 = vlaneseq
    %v252 = vshrl.u32 %v251, 7
    %v253 = vsub.s32 0, %v252
    %v254 = vrot.slane %v249, %v253
    %256 = vmatprep.subr.mxu0 0.0
    %257 = vmatpush1.msra.mxu0 %v232
    %258 = vmatprep.subr.mxu0 0.0
    %259 = vmatpush1.msra.mxu0 %v231
    %260 = vmatprep.subr.mxu0 0.0
    %261 = vmatpush1.msra.mxu0 %v230
    %262 = vmatprep.subr.mxu0 0.0
    %263 = vmatpush1.msra.mxu0 %v229
    %264 = vmatprep.subr.mxu0 0.0
    %265 = vmatpush1.msra.mxu0 %v228
    %266 = vmatprep.subr.mxu0 0.0
    %267 = vmatpush1.msra.mxu0 %v227
    %268 = vmatprep.subr.mxu0 0.0
    %269 = vmatpush1.msra.mxu0 %v226
    %270 = vmatprep.subr.mxu0 0.0
    %271 = vmatpush1.msra.mxu0 %v225
    %272 = vmatprep.subr.mxu0 0.0
    %273 = vmatpush1.msra.mxu0 %v224
    %274 = vmatprep.subr.mxu0 0.0
    %275 = vmatpush1.msra.mxu0 %v223
    %276 = vmatprep.subr.mxu0 0.0
    %277 = vmatpush1.msra.mxu0 %v222
    %278 = vmatprep.subr.mxu0 0.0
    %279 = vmatpush1.msra.mxu0 %v221
    %280 = vmatprep.subr.mxu0 0.0
    %281 = vmatpush1.msra.mxu0 %v220
    %282 = vmatprep.subr.mxu0 0.0
    %283 = vmatpush1.msra.mxu0 %v219
    %284 = vmatprep.subr.mxu0 0.0
    %285 = vmatpush1.msra.mxu0 %v218
    %286 = vmatprep.subr.mxu0 0.0
    %287 = vmatpush1.msra.mxu0 %v217
    %288 = vmatprep.subr.mxu0 0.0
    %289 = vmatpush2.msra.mxu0 %v248
    %290 = vmatprep.subr.mxu0 0.0
    %291 = vmatpush2.msra.mxu0 %v247
    %292 = vmatprep.subr.mxu0 0.0
    %293 = vmatpush2.msra.mxu0 %v246
    %294 = vmatprep.subr.mxu0 0.0
    %295 = vmatpush2.msra.mxu0 %v245
    %296 = vmatprep.subr.mxu0 0.0
    %297 = vmatpush2.msra.mxu0 %v244
    %298 = vmatprep.subr.mxu0 0.0
    %299 = vmatpush2.msra.mxu0 %v243
    %300 = vmatprep.subr.mxu0 0.0
    %301 = vmatpush2.msra.mxu0 %v242
    %302 = vmatprep.subr.mxu0 0.0
    %303 = vmatpush2.msra.mxu0 %v241
    %304 = vmatprep.subr.mxu0 0.0
    %305 = vmatpush2.msra.mxu0 %v240
    %306 = vmatprep.subr.mxu0 0.0
    %307 = vmatpush2.msra.mxu0 %v239
    %308 = vmatprep.subr.mxu0 0.0
    %309 = vmatpush2.msra.mxu0 %v238
    %310 = vmatprep.subr.mxu0 0.0
    %311 = vmatpush2.msra.mxu0 %v237
    %312 = vmatprep.subr.mxu0 0.0
    %313 = vmatpush2.msra.mxu0 %v236
    %314 = vmatprep.subr.mxu0 0.0
    %315 = vmatpush2.msra.mxu0 %v235
    %316 = vmatprep.subr.mxu0 0.0
    %317 = vmatpush2.msra.mxu0 %v234
    %318 = vmatprep.subr.mxu0 0.0
    %319 = vmatpush2.msra.mxu0 %v233
    %320 = vmatprep.mubr.f32.mxu0 %v216
    %321 = vmatmul.mubr.f32.gmra.mxu0 %v215
    %v322 = vpop.f32.mrf.mxu0
    %v323 = vadd.f32 %v254, %v322
    %v324 = vpop.f32.mrf.mxu0
    %325 = vdwg.mxu0
    %326 = vst [vmem:[#allocation7] sm:$0xff] %v323
    // Predicated region
    $region30: #{tpu_custom_call.1} parent=1 // pred_check
      _
    $region31: #{tpu_custom_call.1} parent=1 // pred_check_branch
      %328 = sbr.rel (0) target = $region33
    $region32: #{tpu_custom_call.1} parent=1 // pred_region
      %s330 = ssub.s32 128, 128
      %331 = vsyncadd [#allocation4], %s330
      %s333 = sshll.u32 [#allocation7], 4
      %s334 = int_to_ptr.vmem [resolvable:$true] %s333
      %336 = dma.vmem_to_hbm [thread:$0]  %s334, 128, %s5, [#allocation4]
    $region33: #{tpu_custom_call.1} parent=1 // pred_fallthru
      _
    // Predicated region
    $region34: #{tpu_custom_call.1} parent=1 // pred_check
      _
    $region35: #{tpu_custom_call.1} parent=1 // pred_check_branch
      %338 = sbr.rel (0) target = $region37
    $region36: #{tpu_custom_call.1} parent=1 // pred_region
      %339 = dma.done [#allocation4], 128
    $region37: #{tpu_custom_call.1} parent=1 // pred_fallthru
      _
    %340 = vsyncpa [#allocation3], 1
    %341 = vsyncpa [#allocation6], 1
    %342 = vsyncpa [#allocation4], 1

</llo_original>
